<compile_context>
chip_gen: v6e
topology: v6e:2x2x1
jax: 0.10.0
libtpu: 0.0.40
codegen_flags: <defaults>
</compile_context>

<pallas_src>
import functools

import jax
import jax.numpy as jnp
from jax.experimental import pallas as pl
from jax.experimental.pallas import tpu as pltpu

BN_EPS = 1e-5
TILE_M_DEFAULT = 512                     # 512-row M tiles (512-1024 good on v5e/v6e, <=512 on v7x)
VMEM_LIMIT_BYTES = 48 * 1024 * 1024      # < v7x 64 MiB physical; comfortable on v5e/v6e (128 MiB)
VMEM_TILE_BUDGET = 40 * 1024 * 1024      # cap for the double-buffered phase-1 working set


def _round_up(x, m):
    return (x + m - 1) // m * m


def _pad2d(x, rows, cols):
    pr, pc = rows - x.shape[0], cols - x.shape[1]
    if pr or pc:
        x = jnp.pad(x, ((0, pr), (0, pc)))
    return x


def _pad1d(x, n):
    if x.shape[0] < n:
        x = jnp.pad(x, (0, n - x.shape[0]))
    return x


def _pick_tile_m(M, Kp, Cp, tile_m):
    """Largest M tile (<= tile_m) whose double-buffered phase-1 working set fits the VMEM budget."""
    tm = min(tile_m, _round_up(M, 8))

    def phase1_bytes(t):
        # 2x buffers: bf16 patches + bf16 weights + bf16 raw-y out + f32 (8,Cp) sum/sq accumulators
        return 2 * (t * Kp * 2 + Kp * Cp * 2 + t * Cp * 2 + 2 * 8 * Cp * 4)

    while tm > 8 and phase1_bytes(tm) > VMEM_TILE_BUDGET:
        tm = _round_up(max(8, tm // 2), 8)
    return tm


# ----------------------------------------------------------------------------- kernels
def _conv_stats_kernel(p_ref, w_ref, y_ref, sum_ref, sq_ref):
    """Phase 1: conv tile matmul; emit raw bf16 conv output; accumulate per-channel sum / sum^2."""
    @pl.when(pl.program_id(1) == 0)
    def _():
        sum_ref[...] = jnp.zeros_like(sum_ref)
        sq_ref[...] = jnp.zeros_like(sq_ref)

    y = jnp.dot(p_ref[...], w_ref[...], preferred_element_type=jnp.float32)
    yb = y.astype(jnp.bfloat16)                 # exactly the values phase 2 will normalize
    y_ref[...] = yb
    yf = yb.astype(jnp.float32)
    # (1, Cp) partials broadcast into all 8 sublane rows of the (8, Cp) per-core accumulator
    sum_ref[...] += jnp.sum(yf, axis=0, keepdims=True)
    sq_ref[...] += jnp.sum(yf * yf, axis=0, keepdims=True)


def _bn_epilogue_kernel(y_ref, scale_ref, shift_ref, *rest, relu, has_res):
    """Phase 2 (elementwise only): folded BN scale/shift [+ fused shortcut BN affine] [+ ReLU]."""
    if has_res:
        res_ref, rscale_ref, rshift_ref, o_ref = rest
    else:
        (o_ref,) = rest

    y = y_ref[...].astype(jnp.float32) * scale_ref[...] + shift_ref[...]
    if has_res:
        y = y + (res_ref[...].astype(jnp.float32) * rscale_ref[...] + rshift_ref[...])
    if relu:
        y = jnp.maximum(y, 0.0)
    o_ref[...] = y.astype(o_ref.dtype)


# ----------------------------------------------------------------------------- phase-1 wrapper
def conv_bn_stats_pallas(patches, w, gamma, beta, tile_m=TILE_M_DEFAULT):
    """Single MXU pass: raw bf16 conv output + folded training-mode BN scale/shift."""
    M, K = patches.shape
    Cout = w.shape[1]

    Cp = _round_up(Cout, 128)                 # lane-dense output channels
    Kp = _round_up(K, 128)                    # 128-aligned contraction: unmasked bf16 loads, full MXU feed
    tm = _pick_tile_m(M, Kp, Cp, tile_m)

    n_m = -(-M // tm)
    n_split = 2 if n_m >= 2 else 1            # per-TensorCore partial stats (v7x megacore)
    if n_m % n_split:
        n_m += 1
    Mp = n_m * tm
    n_per = n_m // n_split

    # zero padding is exact: padded rows/cols contribute 0 to the matmul and to the BN sums
    patches_p = _pad2d(patches.astype(jnp.bfloat16), Mp, Kp)
    w_p = _pad2d(w.astype(jnp.bfloat16), Kp, Cp)

    y_raw, sum_o, sq_o = pl.pallas_call(
        _conv_stats_kernel,
        out_shape=(jax.ShapeDtypeStruct((Mp, Cp), jnp.bfloat16),
                   jax.ShapeDtypeStruct((n_split * 8, Cp), jnp.float32),
                   jax.ShapeDtypeStruct((n_split * 8, Cp), jnp.float32)),
        grid=(n_split, n_per),
        in_specs=[
            pl.BlockSpec((tm, Kp), lambda c, m: (c * n_per + m, 0)),
            pl.BlockSpec((Kp, Cp), lambda c, m: (0, 0)),
        ],
        out_specs=(
            pl.BlockSpec((tm, Cp), lambda c, m: (c * n_per + m, 0)),
            pl.BlockSpec((8, Cp), lambda c, m: (c, 0)),
            pl.BlockSpec((8, Cp), lambda c, m: (c, 0)),
        ),
        compiler_params=pltpu.CompilerParams(
            dimension_semantics=("parallel", "arbitrary"),
            vmem_limit_bytes=VMEM_LIMIT_BYTES),
    )(patches_p, w_p)

    # glue: add per-core partials -> batch stats -> fold BN into scale/shift
    # (conv bias is a provable no-op under batch-stat BN, so it is never materialized)
    sum_c = jnp.sum(sum_o[0::8, :], axis=0, keepdims=True)   # row 0 of each split holds its partial
    sq_c = jnp.sum(sq_o[0::8, :], axis=0, keepdims=True)
    inv_m = 1.0 / float(M)                                    # true M: padded rows are exactly zero
    mean = sum_c * inv_m
    var = jnp.maximum(sq_c * inv_m - mean * mean, 0.0)        # clamp one-pass variance (cancellation)
    inv_std = jax.lax.rsqrt(var + BN_EPS)
    gamma_p = _pad1d(gamma.astype(jnp.float32), Cp).reshape(1, Cp)
    beta_p = _pad1d(beta.astype(jnp.float32), Cp).reshape(1, Cp)
    scale = gamma_p * inv_std
    shift = beta_p - mean * scale

    meta = dict(M=M, Cout=Cout, Mp=Mp, Cp=Cp, tm=tm, n_m=n_m)
    return y_raw, scale, shift, meta


# ----------------------------------------------------------------------------- phase-2 wrapper
def bn_epilogue_pallas(y_raw, scale, shift, meta, residual=None, relu=True,
                       out_dtype=jnp.float32):
    """Elementwise BN epilogue over the raw conv output [+ fused shortcut BN affine] [+ ReLU]."""
    M, Cout, Mp, Cp, tm, n_m = (meta[k] for k in ("M", "Cout", "Mp", "Cp", "tm", "n_m"))
    has_res = residual is not None

    def tile_spec():
        if n_m >= 3:
            # pure-DMA pass: a 3rd buffer hides DMA issue latency (most useful at v7x's 3.2 TB/s)
            return pl.BlockSpec((tm, Cp), lambda m: (m, 0), pipeline_mode=pl.Buffered(3))
        return pl.BlockSpec((tm, Cp), lambda m: (m, 0))

    args = [y_raw, scale, shift]
    in_specs = [tile_spec(),
                pl.BlockSpec((1, Cp), lambda m: (0, 0)),
                pl.BlockSpec((1, Cp), lambda m: (0, 0))]

    if has_res:
        res_y, res_scale, res_shift = residual
        if res_y.shape != (Mp, Cp):           # shortcut stats pass may have picked a different tiling
            res_y = _pad2d(res_y[:Mp, :Cp], Mp, Cp)
        args += [res_y, res_scale, res_shift]
        in_specs += [tile_spec(),
                     pl.BlockSpec((1, Cp), lambda m: (0, 0)),
                     pl.BlockSpec((1, Cp), lambda m: (0, 0))]

    kernel = functools.partial(_bn_epilogue_kernel, relu=relu, has_res=has_res)
    out = pl.pallas_call(
        kernel,
        out_shape=jax.ShapeDtypeStruct((Mp, Cp), out_dtype),
        grid=(n_m,),
        in_specs=in_specs,
        out_specs=pl.BlockSpec((tm, Cp), lambda m: (m, 0)),
        compiler_params=pltpu.CompilerParams(
            dimension_semantics=("parallel",),        # independent tiles -> megacore on v7x
            vmem_limit_bytes=VMEM_LIMIT_BYTES),
    )(*args)

    return out[:M, :Cout]


# ----------------------------------------------------------------------------- glue
def _im2col(x_nhwc, kh, kw, stride, pad):
    """Pure slicing/reshape glue: NHWC -> (N*Ho*Wo, kh*kw*C)."""
    if pad:
        x_nhwc = jnp.pad(x_nhwc, ((0, 0), (pad, pad), (pad, pad), (0, 0)))
    N, Hp, Wp, C = x_nhwc.shape
    Ho = (Hp - kh) // stride + 1
    Wo = (Wp - kw) // stride + 1
    cols = []
    for i in range(kh):
        for j in range(kw):
            cols.append(x_nhwc[:, i:i + stride * Ho:stride, j:j + stride * Wo:stride, :])
    patches = jnp.concatenate(cols, axis=-1)             # (N, Ho, Wo, kh*kw*C)
    return patches.reshape(N * Ho * Wo, kh * kw * C), (N, Ho, Wo)


def basic_block_forward(x_nchw, params, stride=1, downsampling=False):
    """Mirrors Basic_block.forward (freshly-initialized module => training-mode BN)."""
    in_plane = x_nchw.shape[1]
    out_plane = params["w2"].shape[-1]
    if in_plane != out_plane:
        downsampling = True

    # NCHW -> NHWC; keep activations bf16 end-to-end (MXU feeds are bf16 anyway)
    x = jnp.transpose(x_nchw, (0, 2, 3, 1)).astype(jnp.bfloat16)

    # conv1 (3x3, stride, pad=1): matmul+stats pass, then elementwise BN+ReLU epilogue (bf16 out)
    p1, (N, H1, W1) = _im2col(x, 3, 3, stride, 1)
    w1 = params["w1"].reshape(-1, params["w1"].shape[-1])
    y1_raw, sc1, sh1, m1 = conv_bn_stats_pallas(p1, w1, params["g1"], params["be1"])
    y1 = bn_epilogue_pallas(y1_raw, sc1, sh1, m1, relu=True, out_dtype=jnp.bfloat16)
    y1 = y1.reshape(N, H1, W1, -1)

    # shortcut (1x1, stride, pad=0): only the matmul+stats pass; its BN affine is fused into conv2
    residual = None
    if downsampling:
        pd, _ = _im2col(x, 1, 1, stride, 0)
        wd = params["wd"].reshape(-1, out_plane)
        yd_raw, scd, shd, _md = conv_bn_stats_pallas(pd, wd, params["gd"], params["bed"])
        residual = (yd_raw, scd, shd)

    # conv2 (3x3, stride=1, pad=1): matmul+stats, then BN (+fused shortcut BN) + ReLU epilogue (f32 out)
    p2, _ = _im2col(y1, 3, 3, 1, 1)
    w2 = params["w2"].reshape(-1, out_plane)
    y2_raw, sc2, sh2, m2 = conv_bn_stats_pallas(p2, w2, params["g2"], params["be2"])
    y2 = bn_epilogue_pallas(y2_raw, sc2, sh2, m2, residual=residual, relu=True,
                            out_dtype=jnp.float32)

    y2 = y2.reshape(N, H1, W1, out_plane)
    return jnp.transpose(y2, (0, 3, 1, 2))               # NHWC -> NCHW


# ----------------------------------------------------------------------------- pure-JAX reference
def _conv_bn_ref(patches, w, gamma, beta, residual=None, relu=True):
    # Conv bias is omitted on purpose: under training-mode (batch-statistics) BatchNorm a
    # per-channel bias shifts the batch mean by the same amount and cancels exactly.
    y = jnp.dot(patches.astype(jnp.bfloat16), w.astype(jnp.bfloat16),
                preferred_element_type=jnp.float32)
    y = y.astype(jnp.bfloat16).astype(jnp.float32)        # mirror the kernel's bf16 staging of y
    mean = jnp.mean(y, axis=0, keepdims=True)
    var = jnp.mean(jnp.square(y - mean), axis=0, keepdims=True)
    out = (y - mean) * jax.lax.rsqrt(var + BN_EPS) * gamma[None, :] + beta[None, :]
    if residual is not None:
        out = out + residual
    if relu:
        out = jnp.maximum(out, 0.0)
    return out


def basic_block_reference(x_nchw, params, stride=1, downsampling=False):
    in_plane = x_nchw.shape[1]
    out_plane = params["w2"].shape[-1]
    if in_plane != out_plane:
        downsampling = True
    x = jnp.transpose(x_nchw, (0, 2, 3, 1)).astype(jnp.float32)
    p1, (N, H1, W1) = _im2col(x, 3, 3, stride, 1)
    y1 = _conv_bn_ref(p1, params["w1"].reshape(-1, params["w1"].shape[-1]),
                      params["g1"], params["be1"], relu=True)
    y1 = y1.reshape(N, H1, W1, -1)
    residual = None
    if downsampling:
        pd, _ = _im2col(x, 1, 1, stride, 0)
        residual = _conv_bn_ref(pd, params["wd"].reshape(-1, out_plane),
                                params["gd"], params["bed"], relu=False)
    p2, _ = _im2col(y1, 3, 3, 1, 1)
    y2 = _conv_bn_ref(p2, params["w2"].reshape(-1, out_plane),
                      params["g2"], params["be2"], residual=residual, relu=True)
    return jnp.transpose(y2.reshape(N, H1, W1, out_plane), (0, 3, 1, 2))


# ----------------------------------------------------------------------------- main
if __name__ == "__main__":
    # Equivalent of len_list slice = [4, 8, 8]  =>  in_plane=4, mid=8, out_plane=8
    # in_plane != out_plane  =>  downsample (1x1 conv+BN) path is active, stride=1.
    N, Cin, H, W = 2, 4, 16, 16
    mid, out_plane = 8, 8
    stride = 1

    key = jax.random.PRNGKey(0)
    k = jax.random.split(key, 8)

    def winit(kk, shape, fan_in):
        return jax.random.normal(kk, shape, jnp.float32) * (1.0 / jnp.sqrt(fan_in))

    params = {
        # conv weights stored as (kh, kw, Cin, Cout) matching im2col column ordering
        "w1": winit(k[0], (3, 3, Cin, mid), 3 * 3 * Cin),
        "b1": 0.1 * jax.random.normal(k[1], (mid,), jnp.float32),   # no-op under batch-stat BN
        "g1": jnp.ones((mid,), jnp.float32),
        "be1": jnp.zeros((mid,), jnp.float32),
        "w2": winit(k[2], (3, 3, mid, out_plane), 3 * 3 * mid),
        "b2": 0.1 * jax.random.normal(k[3], (out_plane,), jnp.float32),
        "g2": jnp.ones((out_plane,), jnp.float32),
        "be2": jnp.zeros((out_plane,), jnp.float32),
        "wd": winit(k[4], (1, 1, Cin, out_plane), Cin),
        "bd": 0.1 * jax.random.normal(k[5], (out_plane,), jnp.float32),
        "gd": jnp.ones((out_plane,), jnp.float32),
        "bed": jnp.zeros((out_plane,), jnp.float32),
    }

    x = jax.random.normal(k[6], (N, Cin, H, W), jnp.float32)

    out = basic_block_forward(x, params, stride=stride)
    out = jax.block_until_ready(out)

    ref = basic_block_reference(x, params, stride=stride)
    assert out.shape == (N, out_plane, H, W), out.shape
    err = float(jnp.max(jnp.abs(out - ref)))
    assert jnp.allclose(out, ref, atol=1e-2, rtol=1e-2), err

    print("KERNEL_OK")
</pallas_src>

<mosaic_0001>
module attributes {stable_mosaic.version = 11 : i64} {
  func.func @_conv_stats_kernel(%arg0: i32, %arg1: i32, %arg2: memref<512x128xbf16, #tpu.memory_space<vmem>>, %arg3: memref<128x128xbf16, #tpu.memory_space<vmem>>, %arg4: memref<512x128xbf16, #tpu.memory_space<vmem>>, %arg5: memref<8x128xf32, #tpu.memory_space<vmem>>, %arg6: memref<8x128xf32, #tpu.memory_space<vmem>>) attributes {dimension_semantics = [#tpu.dimension_semantics<parallel>, #tpu.dimension_semantics<arbitrary>], iteration_bounds = array<i64: 1, 1>, scalar_prefetch = 0 : i64, scratch_operands = 0 : i64, tpu.core_type = #tpu.core_type<tc>, window_params = [{transform_indices = @transform_0, window_bounds = array<i64: 512, 128>}, {pipeline_mode = #tpu.pipeline_mode<synchronous>, transform_indices = @transform_1, window_bounds = array<i64: 128, 128>}, {transform_indices = @transform_2, window_bounds = array<i64: 512, 128>}, {transform_indices = @transform_3, window_bounds = array<i64: 8, 128>}, {transform_indices = @transform_4, window_bounds = array<i64: 8, 128>}]} {
    %c0_i32 = arith.constant 0 : i32
    %0 = arith.cmpi eq, %arg1, %c0_i32 : i32
    %1 = arith.extui %0 : i1 to i32
    %c0_i32_0 = arith.constant 0 : i32
    %2 = arith.cmpi ne, %1, %c0_i32_0 : i32
    scf.if %2 {
      %cst_16 = arith.constant 0.000000e+00 : f32
      %22 = vector.broadcast %cst_16 : f32 to vector<8x128xf32>
      %c0_17 = arith.constant 0 : index
      %c0_18 = arith.constant 0 : index
      %23 = vector.load %arg5[%c0_17, %c0_18] : memref<8x128xf32, #tpu.memory_space<vmem>>, vector<8x128xf32>
      tpu.vector_store %arg5[%c0_17, %c0_18], %22 {strides = array<i32>} : memref<8x128xf32, #tpu.memory_space<vmem>>, vector<8x128xf32>,
      %cst_19 = arith.constant 0.000000e+00 : f32
      %24 = vector.broadcast %cst_19 : f32 to vector<8x128xf32>
      %c0_20 = arith.constant 0 : index
      %c0_21 = arith.constant 0 : index
      %25 = vector.load %arg6[%c0_20, %c0_21] : memref<8x128xf32, #tpu.memory_space<vmem>>, vector<8x128xf32>
      tpu.vector_store %arg6[%c0_20, %c0_21], %24 {strides = array<i32>} : memref<8x128xf32, #tpu.memory_space<vmem>>, vector<8x128xf32>,
    } else {
    }
    %c0 = arith.constant 0 : index
    %c0_1 = arith.constant 0 : index
    %3 = vector.load %arg2[%c0, %c0_1] : memref<512x128xbf16, #tpu.memory_space<vmem>>, vector<512x128xbf16>
    %c0_2 = arith.constant 0 : index
    %c0_3 = arith.constant 0 : index
    %4 = vector.load %arg3[%c0_2, %c0_3] : memref<128x128xbf16, #tpu.memory_space<vmem>>, vector<128x128xbf16>
    %cst = arith.constant dense<0.000000e+00> : vector<512x128xf32>
    %5 = tpu.matmul %3, %4, %cst {dimension_numbers = #tpu.dot_dimension_numbers<[1], [0], [0], [1], [0, 0, 1, 1], [], []>} : vector<512x128xbf16>, vector<128x128xbf16>, vector<512x128xf32> -> vector<512x128xf32>
    %6 = arith.truncf %5 : vector<512x128xf32> to vector<512x128xbf16>
    %c0_4 = arith.constant 0 : index
    %c0_5 = arith.constant 0 : index
    %7 = vector.load %arg4[%c0_4, %c0_5] : memref<512x128xbf16, #tpu.memory_space<vmem>>, vector<512x128xbf16>
    tpu.vector_store %arg4[%c0_4, %c0_5], %6 {strides = array<i32>} : memref<512x128xbf16, #tpu.memory_space<vmem>>, vector<512x128xbf16>,
    %8 = arith.extf %6 : vector<512x128xbf16> to vector<512x128xf32>
    %c0_6 = arith.constant 0 : index
    %c0_7 = arith.constant 0 : index
    %9 = vector.load %arg5[%c0_6, %c0_7] : memref<8x128xf32, #tpu.memory_space<vmem>>, vector<8x128xf32>
    %cst_8 = arith.constant dense<0.000000e+00> : vector<128xf32>
    %10 = vector.multi_reduction <add>, %8, %cst_8 [0] : vector<512x128xf32> to vector<128xf32>
    %11 = vector.shape_cast %10 : vector<128xf32> to vector<1x128xf32>
    %12 = vector.broadcast %11 : vector<1x128xf32> to vector<8x128xf32>
    %13 = arith.addf %9, %12 : vector<8x128xf32>
    %c0_9 = arith.constant 0 : index
    %c0_10 = arith.constant 0 : index
    %14 = vector.load %arg5[%c0_9, %c0_10] : memref<8x128xf32, #tpu.memory_space<vmem>>, vector<8x128xf32>
    tpu.vector_store %arg5[%c0_9, %c0_10], %13 {strides = array<i32>} : memref<8x128xf32, #tpu.memory_space<vmem>>, vector<8x128xf32>,
    %c0_11 = arith.constant 0 : index
    %c0_12 = arith.constant 0 : index
    %15 = vector.load %arg6[%c0_11, %c0_12] : memref<8x128xf32, #tpu.memory_space<vmem>>, vector<8x128xf32>
    %16 = arith.mulf %8, %8 : vector<512x128xf32>
    %cst_13 = arith.constant dense<0.000000e+00> : vector<128xf32>
    %17 = vector.multi_reduction <add>, %16, %cst_13 [0] : vector<512x128xf32> to vector<128xf32>
    %18 = vector.shape_cast %17 : vector<128xf32> to vector<1x128xf32>
    %19 = vector.broadcast %18 : vector<1x128xf32> to vector<8x128xf32>
    %20 = arith.addf %15, %19 : vector<8x128xf32>
    %c0_14 = arith.constant 0 : index
    %c0_15 = arith.constant 0 : index
    %21 = vector.load %arg6[%c0_14, %c0_15] : memref<8x128xf32, #tpu.memory_space<vmem>>, vector<8x128xf32>
    tpu.vector_store %arg6[%c0_14, %c0_15], %20 {strides = array<i32>} : memref<8x128xf32, #tpu.memory_space<vmem>>, vector<8x128xf32>,
    return
  }
  func.func @transform_0(%arg0: i32, %arg1: i32) -> (i32, i32) {
    %c1_i32 = arith.constant 1 : i32
    %0 = arith.muli %arg0, %c1_i32 : i32
    %1 = arith.addi %0, %arg1 : i32
    %c0_i32 = arith.constant 0 : i32
    %c0_i32_0 = arith.constant 0 : i32
    return %1, %c0_i32 : i32, i32
  }
  func.func @transform_1(%arg0: i32, %arg1: i32) -> (i32, i32) {
    %c0_i32 = arith.constant 0 : i32
    %c0_i32_0 = arith.constant 0 : i32
    %c0_i32_1 = arith.constant 0 : i32
    return %c0_i32, %c0_i32_0 : i32, i32
  }
  func.func @transform_2(%arg0: i32, %arg1: i32) -> (i32, i32) {
    %c1_i32 = arith.constant 1 : i32
    %0 = arith.muli %arg0, %c1_i32 : i32
    %1 = arith.addi %0, %arg1 : i32
    %c0_i32 = arith.constant 0 : i32
    %c0_i32_0 = arith.constant 0 : i32
    return %1, %c0_i32 : i32, i32
  }
  func.func @transform_3(%arg0: i32, %arg1: i32) -> (i32, i32) {
    %c0_i32 = arith.constant 0 : i32
    %c0_i32_0 = arith.constant 0 : i32
    return %arg0, %c0_i32 : i32, i32
  }
  func.func @transform_4(%arg0: i32, %arg1: i32) -> (i32, i32) {
    %c0_i32 = arith.constant 0 : i32
    %c0_i32_0 = arith.constant 0 : i32
    return %arg0, %c0_i32 : i32, i32
  }
}

</mosaic_0001>

<llo_original>
// kernel: tpu_custom_call.1
$region0: #{tpu_custom_call.1}
  #allocation0 [shape = 'u32[]', space=smem, size = 0x4, offset = 0x4, fixed_abs, tag = 'smem constant byte address 0x4 - core index']
  #allocation1 [shape = 'u32[144,128]{1,0:T(1,128)}', space=vmem, size = 0x12000, scoped, tag = 'internal scratch']
  %s0 = inlined_call_operand.hbm [shape: bf16[512,128], index: 0, kind: input, shape index: {}]
  %s1 = inlined_call_operand.hbm [shape: bf16[128,128], index: 1, kind: input, shape index: {}]
  %s2 = inlined_call_operand.hbm [shape: bf16[512,128], index: 2, kind: output, shape index: {0}]
  %s3 = inlined_call_operand.hbm [shape: f32[8,128], index: 3, kind: output, shape index: {1}]
  %s4 = inlined_call_operand.hbm [shape: f32[8,128], index: 4, kind: output, shape index: {2}]
  %5 = xla_tuple %s2, %s3, %s4
  %s6 = sld [smem:[#allocation0]]
  $region46: #{tpu_custom_call.1} parent=0
    _
  %s8 = ssub.s32 1, %s6
  %s9 = scalar_select 0, %s8, %s6
  $region1: #{tpu_custom_call.1} parent=0
    #allocation2 [shape = 'u8[131072]{0}', space=vmem, size = 0x20000, scoped, tag = 'input window, operand 0, single buffered']
    #allocation3 [shape = 's32[1]{0}', space=sflag, size = 0x4, scoped, tag = 'scoped memory for tpu_custom_call.1']
    #allocation4 [shape = 's32[1]{0}', space=sflag, size = 0x4, scoped, tag = 'scoped memory for tpu_custom_call.1']
    #allocation5 [shape = 'u8[32768]{0}', space=vmem, size = 0x8000, scoped, tag = 'input window, operand 1, single buffered']
    #allocation6 [shape = 's32[1]{0}', space=sflag, size = 0x4, scoped, tag = 'scoped memory for tpu_custom_call.1']
    #allocation7 [shape = 'u8[131072]{0}', space=vmem, size = 0x20000, scoped, tag = 'output window, operand 0, single buffered']
    #allocation8 [shape = 'u8[4096]{0}', space=vmem, size = 0x1000, scoped, tag = 'output window, operand 1, single buffered']
    #allocation9 [shape = 's32[1]{0}', space=sflag, size = 0x4, scoped, tag = 'scoped memory for tpu_custom_call.1']
    #allocation10 [shape = 'u8[4096]{0}', space=vmem, size = 0x1000, scoped, tag = 'output window, operand 2, single buffered']
    %10 = vsyncpa [#allocation3], 0
    %11 = vsyncpa [#allocation6], 0
    %12 = vsyncpa [#allocation4], 0
    %13 = vsyncpa [#allocation9], 0
    // Predicated region
    $region2: #{tpu_custom_call.1} parent=1 // pred_check
      _
    $region3: #{tpu_custom_call.1} parent=1 // pred_check_branch
      %15 = sbr.rel (0) target = $region5
    $region4: #{tpu_custom_call.1} parent=1 // pred_region
      %s16 = sadd.s32 0, 0
      %s17 = smul.u32 64, %s16
      %s19 = ssub.s32 4096, 4096
      %20 = vsyncadd [#allocation3], %s19
      %s21 = smul.addr %s17, 64
      %s22 = scalar_lea.hbm %s0, %s21
      %s23 = sshll.u32 [#allocation2], 4
      %s24 = int_to_ptr.vmem [resolvable:$true] %s23
      %29 = dma.hbm_to_vmem [thread:$0]  %s22, 4096, %s24, [#allocation3], 64, 64, 4
    $region5: #{tpu_custom_call.1} parent=1 // pred_fallthru
      _
    // Predicated region
    $region6: #{tpu_custom_call.1} parent=1 // pred_check
      _
    $region7: #{tpu_custom_call.1} parent=1 // pred_check_branch
      %31 = sbr.rel (0) target = $region9
    $region8: #{tpu_custom_call.1} parent=1 // pred_region
      %s33 = ssub.s32 1024, 1024
      %34 = vsyncadd [#allocation6], %s33
      %s35 = sshll.u32 [#allocation5], 4
      %s36 = int_to_ptr.vmem [resolvable:$true] %s35
      %41 = dma.hbm_to_vmem [thread:$0]  %s1, 1024, %s36, [#allocation6], 64, 64, 4
    $region9: #{tpu_custom_call.1} parent=1 // pred_fallthru
      _
    // Predicated region
    $region10: #{tpu_custom_call.1} parent=1 // pred_check
      _
    $region11: #{tpu_custom_call.1} parent=1 // pred_check_branch
      %43 = sbr.rel (0) target = $region13
    $region12: #{tpu_custom_call.1} parent=1 // pred_region
      %44 = dma.done [#allocation3], 4096
    $region13: #{tpu_custom_call.1} parent=1 // pred_fallthru
      _
    // Predicated region
    $region14: #{tpu_custom_call.1} parent=1 // pred_check
      _
    $region15: #{tpu_custom_call.1} parent=1 // pred_check_branch
      %46 = sbr.rel (0) target = $region17
    $region16: #{tpu_custom_call.1} parent=1 // pred_region
      %47 = dma.done [#allocation6], 1024
    $region17: #{tpu_custom_call.1} parent=1 // pred_fallthru
      _
    %s48 = sadd.s32 0, 0
    %s49 = smul.u32 64, %s48
    %s50 = sadd.s32 0, 0
    %s51 = smul.u32 64, %s50
    %p53 = scmp.eq.s32.totalorder 0, 0
    // Predicated region
    $region18: #{tpu_custom_call.1} parent=1 // pred_check
      %p54 = pneg %p53
    $region19: #{tpu_custom_call.1} parent=1 // pred_check_branch
      %56 = sbr.rel (%p54) target = $region21
    $region20: #{tpu_custom_call.1} parent=1 // pred_region
      %57 = vst [vmem:[#allocation8] sm:$0xff] 0.0
      %58 = vst [vmem:[#allocation10] sm:$0xff] 0.0
    $region21: #{tpu_custom_call.1} parent=1 // pred_fallthru
      _
    %v59 = vld [vmem:[#allocation2] sm:$0xf]
    %v60 = vld [vmem:[#allocation2 + $0x4] sm:$0xf]
    %v61 = vld [vmem:[#allocation2 + $0x8] sm:$0xf]
    %v62 = vld [vmem:[#allocation2 + $0xc] sm:$0xf]
    %v63 = vld [vmem:[#allocation2 + $0x10] sm:$0xf]
    %v64 = vld [vmem:[#allocation2 + $0x14] sm:$0xf]
    %v65 = vld [vmem:[#allocation2 + $0x18] sm:$0xf]
    %v66 = vld [vmem:[#allocation2 + $0x1c] sm:$0xf]
    %v67 = vld [vmem:[#allocation2 + $0x20] sm:$0xf]
    %v68 = vld [vmem:[#allocation2 + $0x24] sm:$0xf]
    %v69 = vld [vmem:[#allocation2 + $0x28] sm:$0xf]
    %v70 = vld [vmem:[#allocation2 + $0x2c] sm:$0xf]
    %v71 = vld [vmem:[#allocation2 + $0x30] sm:$0xf]
    %v72 = vld [vmem:[#allocation2 + $0x34] sm:$0xf]
    %v73 = vld [vmem:[#allocation2 + $0x38] sm:$0xf]
    %v74 = vld [vmem:[#allocation2 + $0x3c] sm:$0xf]
    %v75 = vld [vmem:[#allocation2 + $0x40] sm:$0xf]
    %v76 = vld [vmem:[#allocation2 + $0x44] sm:$0xf]
    %v77 = vld [vmem:[#allocation2 + $0x48] sm:$0xf]
    %v78 = vld [vmem:[#allocation2 + $0x4c] sm:$0xf]
    %v79 = vld [vmem:[#allocation2 + $0x50] sm:$0xf]
    %v80 = vld [vmem:[#allocation2 + $0x54] sm:$0xf]
    %v81 = vld [vmem:[#allocation2 + $0x58] sm:$0xf]
    %v82 = vld [vmem:[#allocation2 + $0x5c] sm:$0xf]
    %v83 = vld [vmem:[#allocation2 + $0x60] sm:$0xf]
    %v84 = vld [vmem:[#allocation2 + $0x64] sm:$0xf]
    %v85 = vld [vmem:[#allocation2 + $0x68] sm:$0xf]
    %v86 = vld [vmem:[#allocation2 + $0x6c] sm:$0xf]
    %v87 = vld [vmem:[#allocation2 + $0x70] sm:$0xf]
    %v88 = vld [vmem:[#allocation2 + $0x74] sm:$0xf]
    %v89 = vld [vmem:[#allocation2 + $0x78] sm:$0xf]
    %v90 = vld [vmem:[#allocation2 + $0x7c] sm:$0xf]
    %v91 = vld [vmem:[#allocation2 + $0x80] sm:$0xf]
    %v92 = vld [vmem:[#allocation2 + $0x84] sm:$0xf]
    %v93 = vld [vmem:[#allocation2 + $0x88] sm:$0xf]
    %v94 = vld [vmem:[#allocation2 + $0x8c] sm:$0xf]
    %v95 = vld [vmem:[#allocation2 + $0x90] sm:$0xf]
    %v96 = vld [vmem:[#allocation2 + $0x94] sm:$0xf]
    %v97 = vld [vmem:[#allocation2 + $0x98] sm:$0xf]
    %v98 = vld [vmem:[#allocation2 + $0x9c] sm:$0xf]
    %v99 = vld [vmem:[#allocation2 + $0xa0] sm:$0xf]
    %v100 = vld [vmem:[#allocation2 + $0xa4] sm:$0xf]
    %v101 = vld [vmem:[#allocation2 + $0xa8] sm:$0xf]
    %v102 = vld [vmem:[#allocation2 + $0xac] sm:$0xf]
    %v103 = vld [vmem:[#allocation2 + $0xb0] sm:$0xf]
    %v104 = vld [vmem:[#allocation2 + $0xb4] sm:$0xf]
    %v105 = vld [vmem:[#allocation2 + $0xb8] sm:$0xf]
    %v106 = vld [vmem:[#allocation2 + $0xbc] sm:$0xf]
    %v107 = vld [vmem:[#allocation2 + $0xc0] sm:$0xf]
    %v108 = vld [vmem:[#allocation2 + $0xc4] sm:$0xf]
    %v109 = vld [vmem:[#allocation2 + $0xc8] sm:$0xf]
    %v110 = vld [vmem:[#allocation2 + $0xcc] sm:$0xf]
    %v111 = vld [vmem:[#allocation2 + $0xd0] sm:$0xf]
    %v112 = vld [vmem:[#allocation2 + $0xd4] sm:$0xf]
    %v113 = vld [vmem:[#allocation2 + $0xd8] sm:$0xf]
    %v114 = vld [vmem:[#allocation2 + $0xdc] sm:$0xf]
    %v115 = vld [vmem:[#allocation2 + $0xe0] sm:$0xf]
    %v116 = vld [vmem:[#allocation2 + $0xe4] sm:$0xf]
    %v117 = vld [vmem:[#allocation2 + $0xe8] sm:$0xf]
    %v118 = vld [vmem:[#allocation2 + $0xec] sm:$0xf]
    %v119 = vld [vmem:[#allocation2 + $0xf0] sm:$0xf]
    %v120 = vld [vmem:[#allocation2 + $0xf4] sm:$0xf]
    %v121 = vld [vmem:[#allocation2 + $0xf8] sm:$0xf]
    %v122 = vld [vmem:[#allocation2 + $0xfc] sm:$0xf]
    %v123 = vld [vmem:[#allocation5] sm:$0xf]
    %v124 = vld [vmem:[#allocation5 + $0x4] sm:$0xf]
    %v125 = vld [vmem:[#allocation5 + $0x8] sm:$0xf]
    %v126 = vld [vmem:[#allocation5 + $0xc] sm:$0xf]
    %v127 = vld [vmem:[#allocation5 + $0x10] sm:$0xf]
    %v128 = vld [vmem:[#allocation5 + $0x14] sm:$0xf]
    %v129 = vld [vmem:[#allocation5 + $0x18] sm:$0xf]
    %v130 = vld [vmem:[#allocation5 + $0x1c] sm:$0xf]
    %v131 = vld [vmem:[#allocation5 + $0x20] sm:$0xf]
    %v132 = vld [vmem:[#allocation5 + $0x24] sm:$0xf]
    %v133 = vld [vmem:[#allocation5 + $0x28] sm:$0xf]
    %v134 = vld [vmem:[#allocation5 + $0x2c] sm:$0xf]
    %v135 = vld [vmem:[#allocation5 + $0x30] sm:$0xf]
    %v136 = vld [vmem:[#allocation5 + $0x34] sm:$0xf]
    %v137 = vld [vmem:[#allocation5 + $0x38] sm:$0xf]
    %v138 = vld [vmem:[#allocation5 + $0x3c] sm:$0xf]
    %v203 = vunpack.c.l.b16 %v59
    %v204 = vunpack.c.l.b16 %v60
    %v205 = vunpack.c.l.b16 %v61
    %v206 = vunpack.c.l.b16 %v62
    %v207 = vunpack.c.l.b16 %v63
    %v208 = vunpack.c.l.b16 %v64
    %v209 = vunpack.c.l.b16 %v65
    %v210 = vunpack.c.l.b16 %v66
    %v211 = vunpack.c.l.b16 %v67
    %v212 = vunpack.c.l.b16 %v68
    %v213 = vunpack.c.l.b16 %v69
    %v214 = vunpack.c.l.b16 %v70
    %v215 = vunpack.c.l.b16 %v71
    %v216 = vunpack.c.l.b16 %v72
    %v217 = vunpack.c.l.b16 %v73
    %v218 = vunpack.c.l.b16 %v74
    %v219 = vunpack.c.l.b16 %v75
    %v220 = vunpack.c.l.b16 %v76
    %v221 = vunpack.c.l.b16 %v77
    %v222 = vunpack.c.l.b16 %v78
    %v223 = vunpack.c.l.b16 %v79
    %v224 = vunpack.c.l.b16 %v80
    %v225 = vunpack.c.l.b16 %v81
    %v226 = vunpack.c.l.b16 %v82
    %v227 = vunpack.c.l.b16 %v83
    %v228 = vunpack.c.l.b16 %v84
    %v229 = vunpack.c.l.b16 %v85
    %v230 = vunpack.c.l.b16 %v86
    %v231 = vunpack.c.l.b16 %v87
    %v232 = vunpack.c.l.b16 %v88
    %v233 = vunpack.c.l.b16 %v89
    %v234 = vunpack.c.l.b16 %v90
    %v235 = vunpack.c.l.b16 %v91
    %v236 = vunpack.c.l.b16 %v92
    %v237 = vunpack.c.l.b16 %v93
    %v238 = vunpack.c.l.b16 %v94
    %v239 = vunpack.c.l.b16 %v95
    %v240 = vunpack.c.l.b16 %v96
    %v241 = vunpack.c.l.b16 %v97
    %v242 = vunpack.c.l.b16 %v98
    %v243 = vunpack.c.l.b16 %v99
    %v244 = vunpack.c.l.b16 %v100
    %v245 = vunpack.c.l.b16 %v101
    %v246 = vunpack.c.l.b16 %v102
    %v247 = vunpack.c.l.b16 %v103
    %v248 = vunpack.c.l.b16 %v104
    %v249 = vunpack.c.l.b16 %v105
    %v250 = vunpack.c.l.b16 %v106
    %v251 = vunpack.c.l.b16 %v107
    %v252 = vunpack.c.l.b16 %v108
    %v253 = vunpack.c.l.b16 %v109
    %v254 = vunpack.c.l.b16 %v110
    %v255 = vunpack.c.l.b16 %v111
    %v256 = vunpack.c.l.b16 %v112
    %v257 = vunpack.c.l.b16 %v113
    %v258 = vunpack.c.l.b16 %v114
    %v259 = vunpack.c.l.b16 %v115
    %v260 = vunpack.c.l.b16 %v116
    %v261 = vunpack.c.l.b16 %v117
    %v262 = vunpack.c.l.b16 %v118
    %v263 = vunpack.c.l.b16 %v119
    %v264 = vunpack.c.l.b16 %v120
    %v265 = vunpack.c.l.b16 %v121
    %v266 = vunpack.c.l.b16 %v122
    %v267 = vpack.c.b16 %v204, %v203
    %v268 = vpack.c.b16 %v206, %v205
    %v269 = vpack.c.b16 %v208, %v207
    %v270 = vpack.c.b16 %v210, %v209
    %v271 = vpack.c.b16 %v212, %v211
    %v272 = vpack.c.b16 %v214, %v213
    %v273 = vpack.c.b16 %v216, %v215
    %v274 = vpack.c.b16 %v218, %v217
    %v275 = vpack.c.b16 %v220, %v219
    %v276 = vpack.c.b16 %v222, %v221
    %v277 = vpack.c.b16 %v224, %v223
    %v278 = vpack.c.b16 %v226, %v225
    %v279 = vpack.c.b16 %v228, %v227
    %v280 = vpack.c.b16 %v230, %v229
    %v281 = vpack.c.b16 %v232, %v231
    %v282 = vpack.c.b16 %v234, %v233
    %v283 = vpack.c.b16 %v236, %v235
    %v284 = vpack.c.b16 %v238, %v237
    %v285 = vpack.c.b16 %v240, %v239
    %v286 = vpack.c.b16 %v242, %v241
    %v287 = vpack.c.b16 %v244, %v243
    %v288 = vpack.c.b16 %v246, %v245
    %v289 = vpack.c.b16 %v248, %v247
    %v290 = vpack.c.b16 %v250, %v249
    %v291 = vpack.c.b16 %v252, %v251
    %v292 = vpack.c.b16 %v254, %v253
    %v293 = vpack.c.b16 %v256, %v255
    %v294 = vpack.c.b16 %v258, %v257
    %v295 = vpack.c.b16 %v260, %v259
    %v296 = vpack.c.b16 %v262, %v261
    %v297 = vpack.c.b16 %v264, %v263
    %v298 = vpack.c.b16 %v266, %v265
    %v347 = vunpack.c.l.b16 %v123
    %v348 = vunpack.c.l.b16 %v124
    %v349 = vunpack.c.l.b16 %v125
    %v350 = vunpack.c.l.b16 %v126
    %v351 = vunpack.c.l.b16 %v127
    %v352 = vunpack.c.l.b16 %v128
    %v353 = vunpack.c.l.b16 %v129
    %v354 = vunpack.c.l.b16 %v130
    %v355 = vunpack.c.l.b16 %v131
    %v356 = vunpack.c.l.b16 %v132
    %v357 = vunpack.c.l.b16 %v133
    %v358 = vunpack.c.l.b16 %v134
    %v359 = vunpack.c.l.b16 %v135
    %v360 = vunpack.c.l.b16 %v136
    %v361 = vunpack.c.l.b16 %v137
    %v362 = vunpack.c.l.b16 %v138
    %v363 = vpack.c.b16 %v348, %v347
    %v364 = vpack.c.b16 %v350, %v349
    %v365 = vpack.c.b16 %v352, %v351
    %v366 = vpack.c.b16 %v354, %v353
    %v367 = vpack.c.b16 %v356, %v355
    %v368 = vpack.c.b16 %v358, %v357
    %v369 = vpack.c.b16 %v360, %v359
    %v370 = vpack.c.b16 %v362, %v361
    %379 = vmatprep.subr.bf16.mxu0 0
    %380 = vmatpush1.bf16.msra.mxu0 %v370
    %381 = vmatprep.subr.bf16.mxu0 0
    %382 = vmatpush1.bf16.msra.mxu0 %v369
    %383 = vmatprep.subr.bf16.mxu0 0
    %384 = vmatpush1.bf16.msra.mxu0 %v368
    %385 = vmatprep.subr.bf16.mxu0 0
    %386 = vmatpush1.bf16.msra.mxu0 %v367
    %387 = vmatprep.subr.bf16.mxu0 0
    %388 = vmatpush1.bf16.msra.mxu0 %v366
    %389 = vmatprep.subr.bf16.mxu0 0
    %390 = vmatpush1.bf16.msra.mxu0 %v365
    %391 = vmatprep.subr.bf16.mxu0 0
    %392 = vmatpush1.bf16.msra.mxu0 %v364
    %393 = vmatprep.subr.bf16.mxu0 0
    %394 = vmatpush1.bf16.msra.mxu0 %v363
    %395 = vmatprep.subr.bf16.mxu0 0
    %396 = vmatpush2.bf16.msra.mxu0 0
    %397 = vmatprep.subr.bf16.mxu0 0
    %398 = vmatpush2.bf16.msra.mxu0 0
    %399 = vmatprep.subr.bf16.mxu0 0
    %400 = vmatpush2.bf16.msra.mxu0 0
    %401 = vmatprep.subr.bf16.mxu0 0
    %402 = vmatpush2.bf16.msra.mxu0 0
    %403 = vmatprep.subr.bf16.mxu0 0
    %404 = vmatpush2.bf16.msra.mxu0 0
    %405 = vmatprep.subr.bf16.mxu0 0
    %406 = vmatpush2.bf16.msra.mxu0 0
    %407 = vmatprep.subr.bf16.mxu0 0
    %408 = vmatpush2.bf16.msra.mxu0 0
    %409 = vmatprep.subr.bf16.mxu0 0
    %410 = vmatpush2.bf16.msra.mxu0 0
    %411 = vmatprep.mubr.bf16.mxu0 0
    %412 = vmatmul.mubr.bf16.gmra.mxu0 %v267
    %v413 = vpop.f32.mrf.mxu0
    %v414 = vadd.f32 0.0, %v413
    %v415 = vpop.f32.mrf.mxu0
    %v416 = vpop.f32.mrf.mxu0
    %v417 = vadd.f32 0.0, %v416
    %v418 = vpop.f32.mrf.mxu0
    %419 = vmatprep.mubr.bf16.mxu0 0
    %420 = vmatmul.mubr.bf16.gmra.mxu0 %v268
    %v421 = vpop.f32.mrf.mxu0
    %v422 = vadd.f32 0.0, %v421
    %v423 = vpop.f32.mrf.mxu0
    %v424 = vpop.f32.mrf.mxu0
    %v425 = vadd.f32 0.0, %v424
    %v426 = vpop.f32.mrf.mxu0
    %427 = vmatprep.mubr.bf16.mxu0 0
    %428 = vmatmul.mubr.bf16.gmra.mxu0 %v269
    %v429 = vpop.f32.mrf.mxu0
    %v430 = vadd.f32 0.0, %v429
    %v431 = vpop.f32.mrf.mxu0
    %v432 = vpop.f32.mrf.mxu0
    %v433 = vadd.f32 0.0, %v432
    %v434 = vpop.f32.mrf.mxu0
    %435 = vmatprep.mubr.bf16.mxu0 0
    %436 = vmatmul.mubr.bf16.gmra.mxu0 %v270
    %v437 = vpop.f32.mrf.mxu0
    %v438 = vadd.f32 0.0, %v437
    %v439 = vpop.f32.mrf.mxu0
    %v440 = vpop.f32.mrf.mxu0
    %v441 = vadd.f32 0.0, %v440
    %v442 = vpop.f32.mrf.mxu0
    %443 = vmatprep.mubr.bf16.mxu0 0
    %444 = vmatmul.mubr.bf16.gmra.mxu0 %v271
    %v445 = vpop.f32.mrf.mxu0
    %v446 = vadd.f32 0.0, %v445
    %v447 = vpop.f32.mrf.mxu0
    %v448 = vpop.f32.mrf.mxu0
    %v449 = vadd.f32 0.0, %v448
    %v450 = vpop.f32.mrf.mxu0
    %451 = vmatprep.mubr.bf16.mxu0 0
    %452 = vmatmul.mubr.bf16.gmra.mxu0 %v272
    %v453 = vpop.f32.mrf.mxu0
    %v454 = vadd.f32 0.0, %v453
    %v455 = vpop.f32.mrf.mxu0
    %v456 = vpop.f32.mrf.mxu0
    %v457 = vadd.f32 0.0, %v456
    %v458 = vpop.f32.mrf.mxu0
    %459 = vmatprep.mubr.bf16.mxu0 0
    %460 = vmatmul.mubr.bf16.gmra.mxu0 %v273
    %v461 = vpop.f32.mrf.mxu0
    %v462 = vadd.f32 0.0, %v461
    %v463 = vpop.f32.mrf.mxu0
    %v464 = vpop.f32.mrf.mxu0
    %v465 = vadd.f32 0.0, %v464
    %v466 = vpop.f32.mrf.mxu0
    %467 = vmatprep.mubr.bf16.mxu0 0
    %468 = vmatmul.mubr.bf16.gmra.mxu0 %v274
    %v469 = vpop.f32.mrf.mxu0
    %v470 = vadd.f32 0.0, %v469
    %v471 = vpop.f32.mrf.mxu0
    %v472 = vpop.f32.mrf.mxu0
    %v473 = vadd.f32 0.0, %v472
    %v474 = vpop.f32.mrf.mxu0
    %475 = vmatprep.mubr.bf16.mxu0 0
    %476 = vmatmul.mubr.bf16.gmra.mxu0 %v275
    %v477 = vpop.f32.mrf.mxu0
    %v478 = vadd.f32 0.0, %v477
    %v479 = vpop.f32.mrf.mxu0
    %v480 = vpop.f32.mrf.mxu0
    %v481 = vadd.f32 0.0, %v480
    %v482 = vpop.f32.mrf.mxu0
    %483 = vmatprep.mubr.bf16.mxu0 0
    %484 = vmatmul.mubr.bf16.gmra.mxu0 %v276
    %v485 = vpop.f32.mrf.mxu0
    %v486 = vadd.f32 0.0, %v485
    %v487 = vpop.f32.mrf.mxu0
    %v488 = vpop.f32.mrf.mxu0
    %v489 = vadd.f32 0.0, %v488
    %v490 = vpop.f32.mrf.mxu0
    %491 = vmatprep.mubr.bf16.mxu0 0
    %492 = vmatmul.mubr.bf16.gmra.mxu0 %v277
    %v493 = vpop.f32.mrf.mxu0
    %v494 = vadd.f32 0.0, %v493
    %v495 = vpop.f32.mrf.mxu0
    %v496 = vpop.f32.mrf.mxu0
    %v497 = vadd.f32 0.0, %v496
    %v498 = vpop.f32.mrf.mxu0
    %499 = vmatprep.mubr.bf16.mxu0 0
    %500 = vmatmul.mubr.bf16.gmra.mxu0 %v278
    %v501 = vpop.f32.mrf.mxu0
    %v502 = vadd.f32 0.0, %v501
    %v503 = vpop.f32.mrf.mxu0
    %v504 = vpop.f32.mrf.mxu0
    %v505 = vadd.f32 0.0, %v504
    %v506 = vpop.f32.mrf.mxu0
    %507 = vmatprep.mubr.bf16.mxu0 0
    %508 = vmatmul.mubr.bf16.gmra.mxu0 %v279
    %v509 = vpop.f32.mrf.mxu0
    %v510 = vadd.f32 0.0, %v509
    %v511 = vpop.f32.mrf.mxu0
    %v512 = vpop.f32.mrf.mxu0
    %v513 = vadd.f32 0.0, %v512
    %v514 = vpop.f32.mrf.mxu0
    %515 = vmatprep.mubr.bf16.mxu0 0
    %516 = vmatmul.mubr.bf16.gmra.mxu0 %v280
    %v517 = vpop.f32.mrf.mxu0
    %v518 = vadd.f32 0.0, %v517
    %v519 = vpop.f32.mrf.mxu0
    %v520 = vpop.f32.mrf.mxu0
    %v521 = vadd.f32 0.0, %v520
    %v522 = vpop.f32.mrf.mxu0
    %523 = vmatprep.mubr.bf16.mxu0 0
    %524 = vmatmul.mubr.bf16.gmra.mxu0 %v281
    %v525 = vpop.f32.mrf.mxu0
    %v526 = vadd.f32 0.0, %v525
    %v527 = vpop.f32.mrf.mxu0
    %v528 = vpop.f32.mrf.mxu0
    %v529 = vadd.f32 0.0, %v528
    %v530 = vpop.f32.mrf.mxu0
    %531 = vmatprep.mubr.bf16.mxu0 0
    %532 = vmatmul.mubr.bf16.gmra.mxu0 %v282
    %v533 = vpop.f32.mrf.mxu0
    %v534 = vadd.f32 0.0, %v533
    %v535 = vpop.f32.mrf.mxu0
    %v536 = vpop.f32.mrf.mxu0
    %v537 = vadd.f32 0.0, %v536
    %v538 = vpop.f32.mrf.mxu0
    %539 = vmatprep.mubr.bf16.mxu0 0
    %540 = vmatmul.mubr.bf16.gmra.mxu0 %v283
    %v541 = vpop.f32.mrf.mxu0
    %v542 = vadd.f32 0.0, %v541
    %v543 = vpop.f32.mrf.mxu0
    %v544 = vpop.f32.mrf.mxu0
    %v545 = vadd.f32 0.0, %v544
    %v546 = vpop.f32.mrf.mxu0
    %547 = vmatprep.mubr.bf16.mxu0 0
    %548 = vmatmul.mubr.bf16.gmra.mxu0 %v284
    %v549 = vpop.f32.mrf.mxu0
    %v550 = vadd.f32 0.0, %v549
    %v551 = vpop.f32.mrf.mxu0
    %v552 = vpop.f32.mrf.mxu0
    %v553 = vadd.f32 0.0, %v552
    %v554 = vpop.f32.mrf.mxu0
    %555 = vmatprep.mubr.bf16.mxu0 0
    %556 = vmatmul.mubr.bf16.gmra.mxu0 %v285
    %v557 = vpop.f32.mrf.mxu0
    %v558 = vadd.f32 0.0, %v557
    %v559 = vpop.f32.mrf.mxu0
    %v560 = vpop.f32.mrf.mxu0
    %v561 = vadd.f32 0.0, %v560
    %v562 = vpop.f32.mrf.mxu0
    %563 = vmatprep.mubr.bf16.mxu0 0
    %564 = vmatmul.mubr.bf16.gmra.mxu0 %v286
    %v565 = vpop.f32.mrf.mxu0
    %v566 = vadd.f32 0.0, %v565
    %v567 = vpop.f32.mrf.mxu0
    %v568 = vpop.f32.mrf.mxu0
    %v569 = vadd.f32 0.0, %v568
    %v570 = vpop.f32.mrf.mxu0
    %571 = vmatprep.mubr.bf16.mxu0 0
    %572 = vmatmul.mubr.bf16.gmra.mxu0 %v287
    %v573 = vpop.f32.mrf.mxu0
    %v574 = vadd.f32 0.0, %v573
    %v575 = vpop.f32.mrf.mxu0
    %v576 = vpop.f32.mrf.mxu0
    %v577 = vadd.f32 0.0, %v576
    %v578 = vpop.f32.mrf.mxu0
    %579 = vmatprep.mubr.bf16.mxu0 0
    %580 = vmatmul.mubr.bf16.gmra.mxu0 %v288
    %v581 = vpop.f32.mrf.mxu0
    %v582 = vadd.f32 0.0, %v581
    %v583 = vpop.f32.mrf.mxu0
    %v584 = vpop.f32.mrf.mxu0
    %v585 = vadd.f32 0.0, %v584
    %v586 = vpop.f32.mrf.mxu0
    %587 = vmatprep.mubr.bf16.mxu0 0
    %588 = vmatmul.mubr.bf16.gmra.mxu0 %v289
    %v589 = vpop.f32.mrf.mxu0
    %v590 = vadd.f32 0.0, %v589
    %v591 = vpop.f32.mrf.mxu0
    %v592 = vpop.f32.mrf.mxu0
    %v593 = vadd.f32 0.0, %v592
    %v594 = vpop.f32.mrf.mxu0
    %595 = vmatprep.mubr.bf16.mxu0 0
    %596 = vmatmul.mubr.bf16.gmra.mxu0 %v290
    %v597 = vpop.f32.mrf.mxu0
    %v598 = vadd.f32 0.0, %v597
    %v599 = vpop.f32.mrf.mxu0
    %v600 = vpop.f32.mrf.mxu0
    %v601 = vadd.f32 0.0, %v600
    %v602 = vpop.f32.mrf.mxu0
    %603 = vmatprep.mubr.bf16.mxu0 0
    %604 = vmatmul.mubr.bf16.gmra.mxu0 %v291
    %v605 = vpop.f32.mrf.mxu0
    %v606 = vadd.f32 0.0, %v605
    %v607 = vpop.f32.mrf.mxu0
    %v608 = vpop.f32.mrf.mxu0
    %v609 = vadd.f32 0.0, %v608
    %v610 = vpop.f32.mrf.mxu0
    %611 = vmatprep.mubr.bf16.mxu0 0
    %612 = vmatmul.mubr.bf16.gmra.mxu0 %v292
    %v613 = vpop.f32.mrf.mxu0
    %v614 = vadd.f32 0.0, %v613
    %v615 = vpop.f32.mrf.mxu0
    %v616 = vpop.f32.mrf.mxu0
    %v617 = vadd.f32 0.0, %v616
    %v618 = vpop.f32.mrf.mxu0
    %619 = vmatprep.mubr.bf16.mxu0 0
    %620 = vmatmul.mubr.bf16.gmra.mxu0 %v293
    %v621 = vpop.f32.mrf.mxu0
    %v622 = vadd.f32 0.0, %v621
    %v623 = vpop.f32.mrf.mxu0
    %v624 = vpop.f32.mrf.mxu0
    %v625 = vadd.f32 0.0, %v624
    %v626 = vpop.f32.mrf.mxu0
    %627 = vmatprep.mubr.bf16.mxu0 0
    %628 = vmatmul.mubr.bf16.gmra.mxu0 %v294
    %v629 = vpop.f32.mrf.mxu0
    %v630 = vadd.f32 0.0, %v629
    %v631 = vpop.f32.mrf.mxu0
    %v632 = vpop.f32.mrf.mxu0
    %v633 = vadd.f32 0.0, %v632
    %v634 = vpop.f32.mrf.mxu0
    %635 = vmatprep.mubr.bf16.mxu0 0
    %636 = vmatmul.mubr.bf16.gmra.mxu0 %v295
    %v637 = vpop.f32.mrf.mxu0
    %v638 = vadd.f32 0.0, %v637
    %v639 = vpop.f32.mrf.mxu0
    %v640 = vpop.f32.mrf.mxu0
    %v641 = vadd.f32 0.0, %v640
    %v642 = vpop.f32.mrf.mxu0
    %643 = vmatprep.mubr.bf16.mxu0 0
    %644 = vmatmul.mubr.bf16.gmra.mxu0 %v296
    %v645 = vpop.f32.mrf.mxu0
    %v646 = vadd.f32 0.0, %v645
    %v647 = vpop.f32.mrf.mxu0
    %v648 = vpop.f32.mrf.mxu0
    %v649 = vadd.f32 0.0, %v648
    %v650 = vpop.f32.mrf.mxu0
    %651 = vmatprep.mubr.bf16.mxu0 0
    %652 = vmatmul.mubr.bf16.gmra.mxu0 %v297
    %v653 = vpop.f32.mrf.mxu0
    %v654 = vadd.f32 0.0, %v653
    %v655 = vpop.f32.mrf.mxu0
    %v656 = vpop.f32.mrf.mxu0
    %v657 = vadd.f32 0.0, %v656
    %v658 = vpop.f32.mrf.mxu0
    %659 = vmatprep.mubr.bf16.mxu0 0
    %660 = vmatmul.mubr.bf16.gmra.mxu0 %v298
    %v661 = vpop.f32.mrf.mxu0
    %v662 = vadd.f32 0.0, %v661
    %v663 = vpop.f32.mrf.mxu0
    %v664 = vpop.f32.mrf.mxu0
    %v665 = vadd.f32 0.0, %v664
    %v666 = vpop.f32.mrf.mxu0
    %667 = vdwg.mxu0
    %v668 = vpack.c.bf16 %v417, %v414
    %v669 = vpack.c.bf16 %v425, %v422
    %v670 = vpack.c.bf16 %v433, %v430
    %v671 = vpack.c.bf16 %v441, %v438
    %v672 = vpack.c.bf16 %v449, %v446
    %v673 = vpack.c.bf16 %v457, %v454
    %v674 = vpack.c.bf16 %v465, %v462
    %v675 = vpack.c.bf16 %v473, %v470
    %v676 = vpack.c.bf16 %v481, %v478
    %v677 = vpack.c.bf16 %v489, %v486
    %v678 = vpack.c.bf16 %v497, %v494
    %v679 = vpack.c.bf16 %v505, %v502
    %v680 = vpack.c.bf16 %v513, %v510
    %v681 = vpack.c.bf16 %v521, %v518
    %v682 = vpack.c.bf16 %v529, %v526
    %v683 = vpack.c.bf16 %v537, %v534
    %v684 = vpack.c.bf16 %v545, %v542
    %v685 = vpack.c.bf16 %v553, %v550
    %v686 = vpack.c.bf16 %v561, %v558
    %v687 = vpack.c.bf16 %v569, %v566
    %v688 = vpack.c.bf16 %v577, %v574
    %v689 = vpack.c.bf16 %v585, %v582
    %v690 = vpack.c.bf16 %v593, %v590
    %v691 = vpack.c.bf16 %v601, %v598
    %v692 = vpack.c.bf16 %v609, %v606
    %v693 = vpack.c.bf16 %v617, %v614
    %v694 = vpack.c.bf16 %v625, %v622
    %v695 = vpack.c.bf16 %v633, %v630
    %v696 = vpack.c.bf16 %v641, %v638
    %v697 = vpack.c.bf16 %v649, %v646
    %v698 = vpack.c.bf16 %v657, %v654
    %v699 = vpack.c.bf16 %v665, %v662
    %v732 = vunpack.c.l.b16 %v668
    %v733 = vunpack.c.h.b16 %v668
    %v734 = vunpack.c.l.b16 %v669
    %v735 = vunpack.c.h.b16 %v669
    %v736 = vunpack.c.l.b16 %v670
    %v737 = vunpack.c.h.b16 %v670
    %v738 = vunpack.c.l.b16 %v671
    %v739 = vunpack.c.h.b16 %v671
    %v740 = vunpack.c.l.b16 %v672
    %v741 = vunpack.c.h.b16 %v672
    %v742 = vunpack.c.l.b16 %v673
    %v743 = vunpack.c.h.b16 %v673
    %v744 = vunpack.c.l.b16 %v674
    %v745 = vunpack.c.h.b16 %v674
    %v746 = vunpack.c.l.b16 %v675
    %v747 = vunpack.c.h.b16 %v675
    %v748 = vunpack.c.l.b16 %v676
    %v749 = vunpack.c.h.b16 %v676
    %v750 = vunpack.c.l.b16 %v677
    %v751 = vunpack.c.h.b16 %v677
    %v752 = vunpack.c.l.b16 %v678
    %v753 = vunpack.c.h.b16 %v678
    %v754 = vunpack.c.l.b16 %v679
    %v755 = vunpack.c.h.b16 %v679
    %v756 = vunpack.c.l.b16 %v680
    %v757 = vunpack.c.h.b16 %v680
    %v758 = vunpack.c.l.b16 %v681
    %v759 = vunpack.c.h.b16 %v681
    %v760 = vunpack.c.l.b16 %v682
    %v761 = vunpack.c.h.b16 %v682
    %v762 = vunpack.c.l.b16 %v683
    %v763 = vunpack.c.h.b16 %v683
    %v764 = vunpack.c.l.b16 %v684
    %v765 = vunpack.c.h.b16 %v684
    %v766 = vunpack.c.l.b16 %v685
    %v767 = vunpack.c.h.b16 %v685
    %v768 = vunpack.c.l.b16 %v686
    %v769 = vunpack.c.h.b16 %v686
    %v770 = vunpack.c.l.b16 %v687
    %v771 = vunpack.c.h.b16 %v687
    %v772 = vunpack.c.l.b16 %v688
    %v773 = vunpack.c.h.b16 %v688
    %v774 = vunpack.c.l.b16 %v689
    %v775 = vunpack.c.h.b16 %v689
    %v776 = vunpack.c.l.b16 %v690
    %v777 = vunpack.c.h.b16 %v690
    %v778 = vunpack.c.l.b16 %v691
    %v779 = vunpack.c.h.b16 %v691
    %v780 = vunpack.c.l.b16 %v692
    %v781 = vunpack.c.h.b16 %v692
    %v782 = vunpack.c.l.b16 %v693
    %v783 = vunpack.c.h.b16 %v693
    %v784 = vunpack.c.l.b16 %v694
    %v785 = vunpack.c.h.b16 %v694
    %v786 = vunpack.c.l.b16 %v695
    %v787 = vunpack.c.h.b16 %v695
    %v788 = vunpack.c.l.b16 %v696
    %v789 = vunpack.c.h.b16 %v696
    %v790 = vunpack.c.l.b16 %v697
    %v791 = vunpack.c.h.b16 %v697
    %v792 = vunpack.c.l.b16 %v698
    %v793 = vunpack.c.h.b16 %v698
    %v794 = vunpack.c.l.b16 %v699
    %v795 = vunpack.c.h.b16 %v699
    %v796 = vpack.c.b16 %v732, %v732
    %v797 = vpack.c.b16 %v733, %v733
    %v798 = vpack.c.b16 %v734, %v734
    %v799 = vpack.c.b16 %v735, %v735
    %v800 = vpack.c.b16 %v736, %v736
    %v801 = vpack.c.b16 %v737, %v737
    %v802 = vpack.c.b16 %v738, %v738
    %v803 = vpack.c.b16 %v739, %v739
    %v804 = vpack.c.b16 %v740, %v740
    %v805 = vpack.c.b16 %v741, %v741
    %v806 = vpack.c.b16 %v742, %v742
    %v807 = vpack.c.b16 %v743, %v743
    %v808 = vpack.c.b16 %v744, %v744
    %v809 = vpack.c.b16 %v745, %v745
    %v810 = vpack.c.b16 %v746, %v746
    %v811 = vpack.c.b16 %v747, %v747
    %v812 = vpack.c.b16 %v748, %v748
    %v813 = vpack.c.b16 %v749, %v749
    %v814 = vpack.c.b16 %v750, %v750
    %v815 = vpack.c.b16 %v751, %v751
    %v816 = vpack.c.b16 %v752, %v752
    %v817 = vpack.c.b16 %v753, %v753
    %v818 = vpack.c.b16 %v754, %v754
    %v819 = vpack.c.b16 %v755, %v755
    %v820 = vpack.c.b16 %v756, %v756
    %v821 = vpack.c.b16 %v757, %v757
    %v822 = vpack.c.b16 %v758, %v758
    %v823 = vpack.c.b16 %v759, %v759
    %v824 = vpack.c.b16 %v760, %v760
    %v825 = vpack.c.b16 %v761, %v761
    %v826 = vpack.c.b16 %v762, %v762
    %v827 = vpack.c.b16 %v763, %v763
    %v828 = vpack.c.b16 %v764, %v764
    %v829 = vpack.c.b16 %v765, %v765
    %v830 = vpack.c.b16 %v766, %v766
    %v831 = vpack.c.b16 %v767, %v767
    %v832 = vpack.c.b16 %v768, %v768
    %v833 = vpack.c.b16 %v769, %v769
    %v834 = vpack.c.b16 %v770, %v770
    %v835 = vpack.c.b16 %v771, %v771
    %v836 = vpack.c.b16 %v772, %v772
    %v837 = vpack.c.b16 %v773, %v773
    %v838 = vpack.c.b16 %v774, %v774
    %v839 = vpack.c.b16 %v775, %v775
    %v840 = vpack.c.b16 %v776, %v776
    %v841 = vpack.c.b16 %v777, %v777
    %v842 = vpack.c.b16 %v778, %v778
    %v843 = vpack.c.b16 %v779, %v779
    %v844 = vpack.c.b16 %v780, %v780
    %v845 = vpack.c.b16 %v781, %v781
    %v846 = vpack.c.b16 %v782, %v782
    %v847 = vpack.c.b16 %v783, %v783
    %v848 = vpack.c.b16 %v784, %v784
    %v849 = vpack.c.b16 %v785, %v785
    %v850 = vpack.c.b16 %v786, %v786
    %v851 = vpack.c.b16 %v787, %v787
    %v852 = vpack.c.b16 %v788, %v788
    %v853 = vpack.c.b16 %v789, %v789
    %v854 = vpack.c.b16 %v790, %v790
    %v855 = vpack.c.b16 %v791, %v791
    %v856 = vpack.c.b16 %v792, %v792
    %v857 = vpack.c.b16 %v793, %v793
    %v858 = vpack.c.b16 %v794, %v794
    %v859 = vpack.c.b16 %v795, %v795
    %924 = vst [vmem:[#allocation7] sm:$0xf] %v796
    %925 = vst [vmem:[#allocation7 + $0x4] sm:$0xf] %v797
    %926 = vst [vmem:[#allocation7 + $0x8] sm:$0xf] %v798
    %927 = vst [vmem:[#allocation7 + $0xc] sm:$0xf] %v799
    %928 = vst [vmem:[#allocation7 + $0x10] sm:$0xf] %v800
    %929 = vst [vmem:[#allocation7 + $0x14] sm:$0xf] %v801
    %930 = vst [vmem:[#allocation7 + $0x18] sm:$0xf] %v802
    %931 = vst [vmem:[#allocation7 + $0x1c] sm:$0xf] %v803
    %932 = vst [vmem:[#allocation7 + $0x20] sm:$0xf] %v804
    %933 = vst [vmem:[#allocation7 + $0x24] sm:$0xf] %v805
    %934 = vst [vmem:[#allocation7 + $0x28] sm:$0xf] %v806
    %935 = vst [vmem:[#allocation7 + $0x2c] sm:$0xf] %v807
    %936 = vst [vmem:[#allocation7 + $0x30] sm:$0xf] %v808
    %937 = vst [vmem:[#allocation7 + $0x34] sm:$0xf] %v809
    %938 = vst [vmem:[#allocation7 + $0x38] sm:$0xf] %v810
    %939 = vst [vmem:[#allocation7 + $0x3c] sm:$0xf] %v811
    %940 = vst [vmem:[#allocation7 + $0x40] sm:$0xf] %v812
    %941 = vst [vmem:[#allocation7 + $0x44] sm:$0xf] %v813
    %942 = vst [vmem:[#allocation7 + $0x48] sm:$0xf] %v814
    %943 = vst [vmem:[#allocation7 + $0x4c] sm:$0xf] %v815
    %944 = vst [vmem:[#allocation7 + $0x50] sm:$0xf] %v816
    %945 = vst [vmem:[#allocation7 + $0x54] sm:$0xf] %v817
    %946 = vst [vmem:[#allocation7 + $0x58] sm:$0xf] %v818
    %947 = vst [vmem:[#allocation7 + $0x5c] sm:$0xf] %v819
    %948 = vst [vmem:[#allocation7 + $0x60] sm:$0xf] %v820
    %949 = vst [vmem:[#allocation7 + $0x64] sm:$0xf] %v821
    %950 = vst [vmem:[#allocation7 + $0x68] sm:$0xf] %v822
    %951 = vst [vmem:[#allocation7 + $0x6c] sm:$0xf] %v823
    %952 = vst [vmem:[#allocation7 + $0x70] sm:$0xf] %v824
    %953 = vst [vmem:[#allocation7 + $0x74] sm:$0xf] %v825
    %954 = vst [vmem:[#allocation7 + $0x78] sm:$0xf] %v826
    %955 = vst [vmem:[#allocation7 + $0x7c] sm:$0xf] %v827
    %956 = vst [vmem:[#allocation7 + $0x80] sm:$0xf] %v828
    %957 = vst [vmem:[#allocation7 + $0x84] sm:$0xf] %v829
    %958 = vst [vmem:[#allocation7 + $0x88] sm:$0xf] %v830
    %959 = vst [vmem:[#allocation7 + $0x8c] sm:$0xf] %v831
    %960 = vst [vmem:[#allocation7 + $0x90] sm:$0xf] %v832
    %961 = vst [vmem:[#allocation7 + $0x94] sm:$0xf] %v833
    %962 = vst [vmem:[#allocation7 + $0x98] sm:$0xf] %v834
    %963 = vst [vmem:[#allocation7 + $0x9c] sm:$0xf] %v835
    %964 = vst [vmem:[#allocation7 + $0xa0] sm:$0xf] %v836
    %965 = vst [vmem:[#allocation7 + $0xa4] sm:$0xf] %v837
    %966 = vst [vmem:[#allocation7 + $0xa8] sm:$0xf] %v838
    %967 = vst [vmem:[#allocation7 + $0xac] sm:$0xf] %v839
    %968 = vst [vmem:[#allocation7 + $0xb0] sm:$0xf] %v840
    %969 = vst [vmem:[#allocation7 + $0xb4] sm:$0xf] %v841
    %970 = vst [vmem:[#allocation7 + $0xb8] sm:$0xf] %v842
    %971 = vst [vmem:[#allocation7 + $0xbc] sm:$0xf] %v843
    %972 = vst [vmem:[#allocation7 + $0xc0] sm:$0xf] %v844
    %973 = vst [vmem:[#allocation7 + $0xc4] sm:$0xf] %v845
    %974 = vst [vmem:[#allocation7 + $0xc8] sm:$0xf] %v846
    %975 = vst [vmem:[#allocation7 + $0xcc] sm:$0xf] %v847
    %976 = vst [vmem:[#allocation7 + $0xd0] sm:$0xf] %v848
    %977 = vst [vmem:[#allocation7 + $0xd4] sm:$0xf] %v849
    %978 = vst [vmem:[#allocation7 + $0xd8] sm:$0xf] %v850
    %979 = vst [vmem:[#allocation7 + $0xdc] sm:$0xf] %v851
    %980 = vst [vmem:[#allocation7 + $0xe0] sm:$0xf] %v852
    %981 = vst [vmem:[#allocation7 + $0xe4] sm:$0xf] %v853
    %982 = vst [vmem:[#allocation7 + $0xe8] sm:$0xf] %v854
    %983 = vst [vmem:[#allocation7 + $0xec] sm:$0xf] %v855
    %984 = vst [vmem:[#allocation7 + $0xf0] sm:$0xf] %v856
    %985 = vst [vmem:[#allocation7 + $0xf4] sm:$0xf] %v857
    %986 = vst [vmem:[#allocation7 + $0xf8] sm:$0xf] %v858
    %987 = vst [vmem:[#allocation7 + $0xfc] sm:$0xf] %v859
    %v988 = vunpack.c.l.bf16 %v668
    %v989 = vunpack.c.h.bf16 %v668
    %v990 = vunpack.c.l.bf16 %v669
    %v991 = vunpack.c.h.bf16 %v669
    %v992 = vunpack.c.l.bf16 %v670
    %v993 = vunpack.c.h.bf16 %v670
    %v994 = vunpack.c.l.bf16 %v671
    %v995 = vunpack.c.h.bf16 %v671
    %v996 = vunpack.c.l.bf16 %v672
    %v997 = vunpack.c.h.bf16 %v672
    %v998 = vunpack.c.l.bf16 %v673
    %v999 = vunpack.c.h.bf16 %v673
    %v1000 = vunpack.c.l.bf16 %v674
    %v1001 = vunpack.c.h.bf16 %v674
    %v1002 = vunpack.c.l.bf16 %v675
    %v1003 = vunpack.c.h.bf16 %v675
    %v1004 = vunpack.c.l.bf16 %v676
    %v1005 = vunpack.c.h.bf16 %v676
    %v1006 = vunpack.c.l.bf16 %v677
    %v1007 = vunpack.c.h.bf16 %v677
    %v1008 = vunpack.c.l.bf16 %v678
    %v1009 = vunpack.c.h.bf16 %v678
    %v1010 = vunpack.c.l.bf16 %v679
    %v1011 = vunpack.c.h.bf16 %v679
    %v1012 = vunpack.c.l.bf16 %v680
    %v1013 = vunpack.c.h.bf16 %v680
    %v1014 = vunpack.c.l.bf16 %v681
    %v1015 = vunpack.c.h.bf16 %v681
    %v1016 = vunpack.c.l.bf16 %v682
    %v1017 = vunpack.c.h.bf16 %v682
    %v1018 = vunpack.c.l.bf16 %v683
    %v1019 = vunpack.c.h.bf16 %v683
    %v1020 = vunpack.c.l.bf16 %v684
    %v1021 = vunpack.c.h.bf16 %v684
    %v1022 = vunpack.c.l.bf16 %v685
    %v1023 = vunpack.c.h.bf16 %v685
    %v1024 = vunpack.c.l.bf16 %v686
    %v1025 = vunpack.c.h.bf16 %v686
    %v1026 = vunpack.c.l.bf16 %v687
    %v1027 = vunpack.c.h.bf16 %v687
    %v1028 = vunpack.c.l.bf16 %v688
    %v1029 = vunpack.c.h.bf16 %v688
    %v1030 = vunpack.c.l.bf16 %v689
    %v1031 = vunpack.c.h.bf16 %v689
    %v1032 = vunpack.c.l.bf16 %v690
    %v1033 = vunpack.c.h.bf16 %v690
    %v1034 = vunpack.c.l.bf16 %v691
    %v1035 = vunpack.c.h.bf16 %v691
    %v1036 = vunpack.c.l.bf16 %v692
    %v1037 = vunpack.c.h.bf16 %v692
    %v1038 = vunpack.c.l.bf16 %v693
    %v1039 = vunpack.c.h.bf16 %v693
    %v1040 = vunpack.c.l.bf16 %v694
    %v1041 = vunpack.c.h.bf16 %v694
    %v1042 = vunpack.c.l.bf16 %v695
    %v1043 = vunpack.c.h.bf16 %v695
    %v1044 = vunpack.c.l.bf16 %v696
    %v1045 = vunpack.c.h.bf16 %v696
    %v1046 = vunpack.c.l.bf16 %v697
    %v1047 = vunpack.c.h.bf16 %v697
    %v1048 = vunpack.c.l.bf16 %v698
    %v1049 = vunpack.c.h.bf16 %v698
    %v1050 = vunpack.c.l.bf16 %v699
    %v1051 = vunpack.c.h.bf16 %v699
    %v1052 = vld [vmem:[#allocation8] sm:$0xff]
    %v1053 = vadd.f32 %v988, %v989
    %v1054 = vadd.f32 %v1053, %v990
    %v1055 = vadd.f32 %v1054, %v991
    %v1056 = vadd.f32 %v1055, %v992
    %v1057 = vadd.f32 %v1056, %v993
    %v1058 = vadd.f32 %v1057, %v994
    %v1059 = vadd.f32 %v1058, %v995
    %v1060 = vadd.f32 %v1059, %v996
    %v1061 = vadd.f32 %v1060, %v997
    %v1062 = vadd.f32 %v1061, %v998
    %v1063 = vadd.f32 %v1062, %v999
    %v1064 = vadd.f32 %v1063, %v1000
    %v1065 = vadd.f32 %v1064, %v1001
    %v1066 = vadd.f32 %v1065, %v1002
    %v1067 = vadd.f32 %v1066, %v1003
    %v1068 = vadd.f32 %v1067, %v1004
    %v1069 = vadd.f32 %v1068, %v1005
    %v1070 = vadd.f32 %v1069, %v1006
    %v1071 = vadd.f32 %v1070, %v1007
    %v1072 = vadd.f32 %v1071, %v1008
    %v1073 = vadd.f32 %v1072, %v1009
    %v1074 = vadd.f32 %v1073, %v1010
    %v1075 = vadd.f32 %v1074, %v1011
    %v1076 = vadd.f32 %v1075, %v1012
    %v1077 = vadd.f32 %v1076, %v1013
    %v1078 = vadd.f32 %v1077, %v1014
    %v1079 = vadd.f32 %v1078, %v1015
    %v1080 = vadd.f32 %v1079, %v1016
    %v1081 = vadd.f32 %v1080, %v1017
    %v1082 = vadd.f32 %v1081, %v1018
    %v1083 = vadd.f32 %v1082, %v1019
    %v1084 = vadd.f32 %v1083, %v1020
    %v1085 = vadd.f32 %v1084, %v1021
    %v1086 = vadd.f32 %v1085, %v1022
    %v1087 = vadd.f32 %v1086, %v1023
    %v1088 = vadd.f32 %v1087, %v1024
    %v1089 = vadd.f32 %v1088, %v1025
    %v1090 = vadd.f32 %v1089, %v1026
    %v1091 = vadd.f32 %v1090, %v1027
    %v1092 = vadd.f32 %v1091, %v1028
    %v1093 = vadd.f32 %v1092, %v1029
    %v1094 = vadd.f32 %v1093, %v1030
    %v1095 = vadd.f32 %v1094, %v1031
    %v1096 = vadd.f32 %v1095, %v1032
    %v1097 = vadd.f32 %v1096, %v1033
    %v1098 = vadd.f32 %v1097, %v1034
    %v1099 = vadd.f32 %v1098, %v1035
    %v1100 = vadd.f32 %v1099, %v1036
    %v1101 = vadd.f32 %v1100, %v1037
    %v1102 = vadd.f32 %v1101, %v1038
    %v1103 = vadd.f32 %v1102, %v1039
    %v1104 = vadd.f32 %v1103, %v1040
    %v1105 = vadd.f32 %v1104, %v1041
    %v1106 = vadd.f32 %v1105, %v1042
    %v1107 = vadd.f32 %v1106, %v1043
    %v1108 = vadd.f32 %v1107, %v1044
    %v1109 = vadd.f32 %v1108, %v1045
    %v1110 = vadd.f32 %v1109, %v1046
    %v1111 = vadd.f32 %v1110, %v1047
    %v1112 = vadd.f32 %v1111, %v1048
    %v1113 = vadd.f32 %v1112, %v1049
    %v1114 = vadd.f32 %v1113, %v1050
    %v1115 = vadd.f32 %v1114, %v1051
    %v1116 = vrot.slane %v1115, 4
    %v1117 = vadd.f32 %v1115, %v1116
    %v1118 = vrot.slane %v1117, 2
    %v1119 = vadd.f32 %v1117, %v1118
    %v1120 = vrot.slane %v1119, 1
    %v1121 = vadd.f32 %v1119, %v1120
    %v1122 = vadd.f32 %v1052, %v1121
    %1123 = vst [vmem:[#allocation8] sm:$0xff] %v1122
    %v1124 = vld [vmem:[#allocation10] sm:$0xff]
    %v1125 = vmul.f32 %v988, %v988
    %v1126 = vmul.f32 %v989, %v989
    %v1127 = vmul.f32 %v990, %v990
    %v1128 = vmul.f32 %v991, %v991
    %v1129 = vmul.f32 %v992, %v992
    %v1130 = vmul.f32 %v993, %v993
    %v1131 = vmul.f32 %v994, %v994
    %v1132 = vmul.f32 %v995, %v995
    %v1133 = vmul.f32 %v996, %v996
    %v1134 = vmul.f32 %v997, %v997
    %v1135 = vmul.f32 %v998, %v998
    %v1136 = vmul.f32 %v999, %v999
    %v1137 = vmul.f32 %v1000, %v1000
    %v1138 = vmul.f32 %v1001, %v1001
    %v1139 = vmul.f32 %v1002, %v1002
    %v1140 = vmul.f32 %v1003, %v1003
    %v1141 = vmul.f32 %v1004, %v1004
    %v1142 = vmul.f32 %v1005, %v1005
    %v1143 = vmul.f32 %v1006, %v1006
    %v1144 = vmul.f32 %v1007, %v1007
    %v1145 = vmul.f32 %v1008, %v1008
    %v1146 = vmul.f32 %v1009, %v1009
    %v1147 = vmul.f32 %v1010, %v1010
    %v1148 = vmul.f32 %v1011, %v1011
    %v1149 = vmul.f32 %v1012, %v1012
    %v1150 = vmul.f32 %v1013, %v1013
    %v1151 = vmul.f32 %v1014, %v1014
    %v1152 = vmul.f32 %v1015, %v1015
    %v1153 = vmul.f32 %v1016, %v1016
    %v1154 = vmul.f32 %v1017, %v1017
    %v1155 = vmul.f32 %v1018, %v1018
    %v1156 = vmul.f32 %v1019, %v1019
    %v1157 = vmul.f32 %v1020, %v1020
    %v1158 = vmul.f32 %v1021, %v1021
    %v1159 = vmul.f32 %v1022, %v1022
    %v1160 = vmul.f32 %v1023, %v1023
    %v1161 = vmul.f32 %v1024, %v1024
    %v1162 = vmul.f32 %v1025, %v1025
    %v1163 = vmul.f32 %v1026, %v1026
    %v1164 = vmul.f32 %v1027, %v1027
    %v1165 = vmul.f32 %v1028, %v1028
    %v1166 = vmul.f32 %v1029, %v1029
    %v1167 = vmul.f32 %v1030, %v1030
    %v1168 = vmul.f32 %v1031, %v1031
    %v1169 = vmul.f32 %v1032, %v1032
    %v1170 = vmul.f32 %v1033, %v1033
    %v1171 = vmul.f32 %v1034, %v1034
    %v1172 = vmul.f32 %v1035, %v1035
    %v1173 = vmul.f32 %v1036, %v1036
    %v1174 = vmul.f32 %v1037, %v1037
    %v1175 = vmul.f32 %v1038, %v1038
    %v1176 = vmul.f32 %v1039, %v1039
    %v1177 = vmul.f32 %v1040, %v1040
    %v1178 = vmul.f32 %v1041, %v1041
    %v1179 = vmul.f32 %v1042, %v1042
    %v1180 = vmul.f32 %v1043, %v1043
    %v1181 = vmul.f32 %v1044, %v1044
    %v1182 = vmul.f32 %v1045, %v1045
    %v1183 = vmul.f32 %v1046, %v1046
    %v1184 = vmul.f32 %v1047, %v1047
    %v1185 = vmul.f32 %v1048, %v1048
    %v1186 = vmul.f32 %v1049, %v1049
    %v1187 = vmul.f32 %v1050, %v1050
    %v1188 = vmul.f32 %v1051, %v1051
    %v1189 = vadd.f32 %v1125, %v1126
    %v1190 = vadd.f32 %v1189, %v1127
    %v1191 = vadd.f32 %v1190, %v1128
    %v1192 = vadd.f32 %v1191, %v1129
    %v1193 = vadd.f32 %v1192, %v1130
    %v1194 = vadd.f32 %v1193, %v1131
    %v1195 = vadd.f32 %v1194, %v1132
    %v1196 = vadd.f32 %v1195, %v1133
    %v1197 = vadd.f32 %v1196, %v1134
    %v1198 = vadd.f32 %v1197, %v1135
    %v1199 = vadd.f32 %v1198, %v1136
    %v1200 = vadd.f32 %v1199, %v1137
    %v1201 = vadd.f32 %v1200, %v1138
    %v1202 = vadd.f32 %v1201, %v1139
    %v1203 = vadd.f32 %v1202, %v1140
    %v1204 = vadd.f32 %v1203, %v1141
    %v1205 = vadd.f32 %v1204, %v1142
    %v1206 = vadd.f32 %v1205, %v1143
    %v1207 = vadd.f32 %v1206, %v1144
    %v1208 = vadd.f32 %v1207, %v1145
    %v1209 = vadd.f32 %v1208, %v1146
    %v1210 = vadd.f32 %v1209, %v1147
    %v1211 = vadd.f32 %v1210, %v1148
    %v1212 = vadd.f32 %v1211, %v1149
    %v1213 = vadd.f32 %v1212, %v1150
    %v1214 = vadd.f32 %v1213, %v1151
    %v1215 = vadd.f32 %v1214, %v1152
    %v1216 = vadd.f32 %v1215, %v1153
    %v1217 = vadd.f32 %v1216, %v1154
    %v1218 = vadd.f32 %v1217, %v1155
    %v1219 = vadd.f32 %v1218, %v1156
    %v1220 = vadd.f32 %v1219, %v1157
    %v1221 = vadd.f32 %v1220, %v1158
    %v1222 = vadd.f32 %v1221, %v1159
    %v1223 = vadd.f32 %v1222, %v1160
    %v1224 = vadd.f32 %v1223, %v1161
    %v1225 = vadd.f32 %v1224, %v1162
    %v1226 = vadd.f32 %v1225, %v1163
    %v1227 = vadd.f32 %v1226, %v1164
    %v1228 = vadd.f32 %v1227, %v1165
    %v1229 = vadd.f32 %v1228, %v1166
    %v1230 = vadd.f32 %v1229, %v1167
    %v1231 = vadd.f32 %v1230, %v1168
    %v1232 = vadd.f32 %v1231, %v1169
    %v1233 = vadd.f32 %v1232, %v1170
    %v1234 = vadd.f32 %v1233, %v1171
    %v1235 = vadd.f32 %v1234, %v1172
    %v1236 = vadd.f32 %v1235, %v1173
    %v1237 = vadd.f32 %v1236, %v1174
    %v1238 = vadd.f32 %v1237, %v1175
    %v1239 = vadd.f32 %v1238, %v1176
    %v1240 = vadd.f32 %v1239, %v1177
    %v1241 = vadd.f32 %v1240, %v1178
    %v1242 = vadd.f32 %v1241, %v1179
    %v1243 = vadd.f32 %v1242, %v1180
    %v1244 = vadd.f32 %v1243, %v1181
    %v1245 = vadd.f32 %v1244, %v1182
    %v1246 = vadd.f32 %v1245, %v1183
    %v1247 = vadd.f32 %v1246, %v1184
    %v1248 = vadd.f32 %v1247, %v1185
    %v1249 = vadd.f32 %v1248, %v1186
    %v1250 = vadd.f32 %v1249, %v1187
    %v1251 = vadd.f32 %v1250, %v1188
    %v1252 = vrot.slane %v1251, 4
    %v1253 = vadd.f32 %v1251, %v1252
    %v1254 = vrot.slane %v1253, 2
    %v1255 = vadd.f32 %v1253, %v1254
    %v1256 = vrot.slane %v1255, 1
    %v1257 = vadd.f32 %v1255, %v1256
    %v1258 = vadd.f32 %v1124, %v1257
    %1259 = vst [vmem:[#allocation10] sm:$0xff] %v1258
    // Predicated region
    $region22: #{tpu_custom_call.1} parent=1 // pred_check
      _
    $region23: #{tpu_custom_call.1} parent=1 // pred_check_branch
      %1261 = sbr.rel (0) target = $region25
    $region24: #{tpu_custom_call.1} parent=1 // pred_region
      %s1262 = sadd.s32 0, 0
      %s1263 = smul.u32 64, %s1262
      %s1265 = ssub.s32 4096, 4096
      %1266 = vsyncadd [#allocation4], %s1265
      %s1267 = smul.addr %s1263, 64
      %s1268 = scalar_lea.hbm %s2, %s1267
      %s1269 = sshll.u32 [#allocation7], 4
      %s1270 = int_to_ptr.vmem [resolvable:$true] %s1269
      %1275 = dma.vmem_to_hbm [thread:$0]  %s1270, 4096, %s1268, [#allocation4], 64, 64, 4
    $region25: #{tpu_custom_call.1} parent=1 // pred_fallthru
      _
    // Predicated region
    $region26: #{tpu_custom_call.1} parent=1 // pred_check
      _
    $region27: #{tpu_custom_call.1} parent=1 // pred_check_branch
      %1277 = sbr.rel (0) target = $region29
    $region28: #{tpu_custom_call.1} parent=1 // pred_region
      %s1279 = ssub.s32 128, 128
      %1280 = vsyncadd [#allocation9], %s1279
      %s1282 = sshll.u32 [#allocation8], 4
      %s1283 = int_to_ptr.vmem [resolvable:$true] %s1282
      %1285 = dma.vmem_to_hbm [thread:$0]  %s1283, 128, %s3, [#allocation9]
    $region29: #{tpu_custom_call.1} parent=1 // pred_fallthru
      _
    // Predicated region
    $region30: #{tpu_custom_call.1} parent=1 // pred_check
      _
    $region31: #{tpu_custom_call.1} parent=1 // pred_check_branch
      %1287 = sbr.rel (0) target = $region33
    $region32: #{tpu_custom_call.1} parent=1 // pred_region
      %s1289 = ssub.s32 128, 128
      %1290 = vsyncadd [#allocation9], %s1289
      %s1292 = sshll.u32 [#allocation10], 4
      %s1293 = int_to_ptr.vmem [resolvable:$true] %s1292
      %1295 = dma.vmem_to_hbm [thread:$0]  %s1293, 128, %s4, [#allocation9]
    $region33: #{tpu_custom_call.1} parent=1 // pred_fallthru
      _
    // Predicated region
    $region34: #{tpu_custom_call.1} parent=1 // pred_check
      _
    $region35: #{tpu_custom_call.1} parent=1 // pred_check_branch
      %1297 = sbr.rel (0) target = $region37
    $region36: #{tpu_custom_call.1} parent=1 // pred_region
      %1298 = dma.done [#allocation4], 4096
    $region37: #{tpu_custom_call.1} parent=1 // pred_fallthru
      _
    // Predicated region
    $region38: #{tpu_custom_call.1} parent=1 // pred_check
      _
    $region39: #{tpu_custom_call.1} parent=1 // pred_check_branch
      %1300 = sbr.rel (0) target = $region41
    $region40: #{tpu_custom_call.1} parent=1 // pred_region
      %1301 = dma.done [#allocation9], 128
    $region41: #{tpu_custom_call.1} parent=1 // pred_fallthru
      _
    // Predicated region
    $region42: #{tpu_custom_call.1} parent=1 // pred_check
      _
    $region43: #{tpu_custom_call.1} parent=1 // pred_check_branch
      %1303 = sbr.rel (0) target = $region45
    $region44: #{tpu_custom_call.1} parent=1 // pred_region
      %1304 = dma.done [#allocation9], 128
    $region45: #{tpu_custom_call.1} parent=1 // pred_fallthru
      _
    %1305 = vsyncpa [#allocation3], 1
    %1306 = vsyncpa [#allocation6], 1
    %1307 = vsyncpa [#allocation4], 1
    %1308 = vsyncpa [#allocation9], 1

</llo_original>
